<compile_context>
chip_gen: v5e
topology: v5e:2x2
jax: 0.10.0
libtpu: 0.0.40
codegen_flags: <defaults>
</compile_context>

<pallas_src>
import jax
import jax.numpy as jnp
from jax import lax
from jax.experimental import pallas as pl
from jax.experimental.pallas import tpu as pltpu


def _make_upconv_kernel(H, W, Cin, pad):
    """Builds the fused 3x3-conv kernel for one batch element.

    Refs seen by the kernel:
      x_ref:    (Cin, H*W)          flattened-spatial input (lane-dense)
      w_ref:    (Cout, 9*Cin)       im2col weights (resident across grid)
      b_ref:    (Cout, 1)           f32 bias (broadcast over lanes)
      o_ref:    (Cout, H*W)         conv output (lane-dense, unmasked stores)
      padf_ref: (Cin, H*W + 2*pad)  VMEM scratch: zero-haloed flat image
      col_ref:  (9*Cin, H*W)        VMEM scratch: im2col patch matrix
    """
    HW = H * W
    taps = [(dy, dx) for dy in (-1, 0, 1) for dx in (-1, 0, 1)]  # ky*3+kx order

    def kernel(x_ref, w_ref, b_ref, o_ref, padf_ref, col_ref):
        # --- 1. refresh the two zero halo stripes (128-lane aligned, unmasked
        # stores) and drop the image into the interior.  Re-done every step:
        # cheap (2 half-vreg stores) and safe under megacore grid sharding.
        zeros_stripe = jnp.zeros((Cin, pad), padf_ref.dtype)
        padf_ref[:, :pad] = zeros_stripe
        padf_ref[:, pad + HW:] = zeros_stripe
        padf_ref[:, pad:pad + HW] = x_ref[...]   # 'pad' is lane-tile aligned

        # --- 2. lane masks for the horizontal taps (hoisted out of the loop).
        wpos = lax.broadcasted_iota(jnp.int32, (1, HW), 1) % W
        left_ok = wpos >= 1          # valid lanes when dx == -1
        right_ok = wpos < (W - 1)    # valid lanes when dx == +1

        # --- 3. build the (9*Cin, H*W) im2col matrix with 9 static shifted
        # slices.  Vertical (dy) out-of-bounds reads land in the zero halo;
        # only the horizontal wrap across rows of the flattened image needs a
        # lane mask (VPU select, free next to the MXU work).
        for t, (dy, dx) in enumerate(taps):
            start = pad + dy * W + dx            # static slice offset
            piece = padf_ref[:, start:start + HW]
            if dx == -1:
                piece = jnp.where(left_ok, piece, 0.0)
            elif dx == 1:
                piece = jnp.where(right_ok, piece, 0.0)
            col_ref[t * Cin:(t + 1) * Cin, :] = piece

        # --- 4. single MXU matmul, K = 9*Cin, N = H*W on the lane axis.
        acc = jnp.dot(w_ref[...], col_ref[...],
                      preferred_element_type=jnp.float32)
        acc = acc + b_ref[...].astype(jnp.float32)
        o_ref[...] = acc.astype(o_ref.dtype)

    return kernel


def up_block(x_nchw, weight, bias):
    """UpBlock forward: Conv2d(in, 4*out, 3, pad=1) then PixelShuffle(2).

    x_nchw: (N, Cin, H, W); weight: (4*out, Cin, 3, 3); bias: (4*out,).
    Returns (N, out, 2H, 2W).  Runs in x's dtype (feed bf16 on v6e/v7x if the
    surrounding model tolerates it; accumulation stays f32).
    """
    N, Cin, H, W = x_nchw.shape
    Cout = weight.shape[0]
    assert Cout % 4 == 0
    oc = Cout // 4
    HW = H * W
    # Left/right zero halo of the flattened image; rounded up to a lane tile
    # so the interior store in the kernel is 128-lane aligned. Must be >= W+1.
    pad = -(-(W + 1) // 128) * 128

    dt = x_nchw.dtype
    xf = x_nchw.reshape(N, Cin, HW)                       # free reshape, no copy
    # (Cout, Cin, 3, 3) -> (Cout, 3, 3, Cin) -> (Cout, 9*Cin); column order
    # (ky*3+kx)*Cin + c matches the kernel's tap/channel row order.
    w2 = jnp.transpose(weight, (0, 2, 3, 1)).reshape(Cout, 9 * Cin).astype(dt)
    b2 = bias.reshape(Cout, 1).astype(jnp.float32)

    kernel = _make_upconv_kernel(H, W, Cin, pad)
    conv_flat = pl.pallas_call(
        kernel,
        out_shape=jax.ShapeDtypeStruct((N, Cout, HW), dt),
        grid=(N,),
        in_specs=[
            pl.BlockSpec((None, Cin, HW), lambda n: (n, 0, 0)),
            pl.BlockSpec((Cout, 9 * Cin), lambda n: (0, 0)),   # resident
            pl.BlockSpec((Cout, 1), lambda n: (0, 0)),         # resident
        ],
        out_specs=pl.BlockSpec((None, Cout, HW), lambda n: (n, 0, 0)),
        scratch_shapes=[
            pltpu.VMEM((Cin, HW + 2 * pad), dt),   # zero-haloed flat image
            pltpu.VMEM((9 * Cin, HW), dt),         # im2col matrix
        ],
        compiler_params=pltpu.CompilerParams(
            dimension_semantics=("parallel",)),
    )(xf, w2, b2)

    # PixelShuffle(2) + layout restore in ONE fused XLA transpose:
    # (N, Cout, H*W) -> (N, oc, 2, 2, H, W) [free] -> (N, oc, H, 2, W, 2)
    # -> (N, oc, 2H, 2W) [free].  Doing this in-kernel would need stride-2
    # lane-interleaved (masked) stores, defeating the lane-dense output.
    y = conv_flat.reshape(N, oc, 2, 2, H, W)
    y = jnp.transpose(y, (0, 1, 4, 2, 5, 3))
    return y.reshape(N, oc, 2 * H, 2 * W)


# ----------------------------- reference path -------------------------------

def _pixel_shuffle_nchw(x, r):
    N, C, H, W = x.shape
    oc = C // (r * r)
    x = x.reshape(N, oc, r, r, H, W)
    x = jnp.transpose(x, (0, 1, 4, 2, 5, 3))
    return x.reshape(N, oc, H * r, W * r)


def _reference_up_block(x_nchw, weight, bias):
    y = lax.conv_general_dilated(
        x_nchw, weight, window_strides=(1, 1), padding=((1, 1), (1, 1)),
        dimension_numbers=("NCHW", "OIHW", "NCHW"))
    y = y + bias.reshape(1, -1, 1, 1)
    return _pixel_shuffle_nchw(y, 2)


if __name__ == "__main__":
    # Small shapes consistent with the module.
    N, in_channels, out_channels, H, W = 2, 4, 4, 16, 16
    conv_out_channels = 4 * out_channels  # = 16

    key = jax.random.PRNGKey(0)
    kx, kw, kb = jax.random.split(key, 3)

    x = jax.random.normal(kx, (N, in_channels, H, W), dtype=jnp.float32)
    fan_in = in_channels * 3 * 3
    bound = 1.0 / (fan_in ** 0.5)
    weight = jax.random.uniform(
        kw, (conv_out_channels, in_channels, 3, 3),
        minval=-bound, maxval=bound, dtype=jnp.float32)
    bias = jax.random.uniform(
        kb, (conv_out_channels,), minval=-bound, maxval=bound,
        dtype=jnp.float32)

    out = jax.block_until_ready(jax.jit(up_block)(x, weight, bias))
    ref = jax.block_until_ready(_reference_up_block(x, weight, bias))

    assert out.shape == (N, out_channels, 2 * H, 2 * W), out.shape
    assert jnp.allclose(out, ref, atol=1e-5, rtol=1e-5), float(
        jnp.max(jnp.abs(out - ref)))
    print("KERNEL_OK")
</pallas_src>

<mosaic_0001>
module attributes {stable_mosaic.version = 11 : i64} {
  func.func @kernel(%arg0: i32, %arg1: memref<1x4x256xf32, #tpu.memory_space<vmem>>, %arg2: memref<16x36xf32, #tpu.memory_space<vmem>>, %arg3: memref<16x1xf32, #tpu.memory_space<vmem>>, %arg4: memref<1x16x256xf32, #tpu.memory_space<vmem>>, %arg5: memref<4x512xf32, #tpu.memory_space<vmem>>, %arg6: memref<36x256xf32, #tpu.memory_space<vmem>>) attributes {dimension_semantics = [#tpu.dimension_semantics<parallel>], iteration_bounds = array<i64: 2>, scalar_prefetch = 0 : i64, scratch_operands = 2 : i64, tpu.core_type = #tpu.core_type<tc>, window_params = [{transform_indices = @transform_0, window_bounds = array<i64: 1, 4, 256>}, {pipeline_mode = #tpu.pipeline_mode<synchronous>, transform_indices = @transform_1, window_bounds = array<i64: 16, 36>}, {pipeline_mode = #tpu.pipeline_mode<synchronous>, transform_indices = @transform_2, window_bounds = array<i64: 16, 1>}, {transform_indices = @transform_3, window_bounds = array<i64: 1, 16, 256>}]} {
    %cst = arith.constant 0.000000e+00 : f32
    %0 = vector.broadcast %cst : f32 to vector<4x128xf32>
    %c0 = arith.constant 0 : index
    %c0_0 = arith.constant 0 : index
    %1 = vector.load %arg5[%c0, %c0_0] : memref<4x512xf32, #tpu.memory_space<vmem>>, vector<4x128xf32>
    tpu.vector_store %arg5[%c0, %c0_0], %0 {strides = array<i32>} : memref<4x512xf32, #tpu.memory_space<vmem>>, vector<4x128xf32>,
    %c0_1 = arith.constant 0 : index
    %c384 = arith.constant 384 : index
    %2 = vector.load %arg5[%c0_1, %c384] : memref<4x512xf32, #tpu.memory_space<vmem>>, vector<4x128xf32>
    tpu.vector_store %arg5[%c0_1, %c384], %0 {strides = array<i32>} : memref<4x512xf32, #tpu.memory_space<vmem>>, vector<4x128xf32>,
    %c0_2 = arith.constant 0 : index
    %c0_3 = arith.constant 0 : index
    %c0_4 = arith.constant 0 : index
    %3 = vector.load %arg1[%c0_2, %c0_3, %c0_4] : memref<1x4x256xf32, #tpu.memory_space<vmem>>, vector<1x4x256xf32>
    %4 = vector.shape_cast %3 : vector<1x4x256xf32> to vector<4x256xf32>
    %c0_5 = arith.constant 0 : index
    %c128 = arith.constant 128 : index
    %5 = vector.load %arg5[%c0_5, %c128] : memref<4x512xf32, #tpu.memory_space<vmem>>, vector<4x256xf32>
    tpu.vector_store %arg5[%c0_5, %c128], %4 {strides = array<i32>} : memref<4x512xf32, #tpu.memory_space<vmem>>, vector<4x256xf32>,
    %6 = tpu.iota {dimensions = array<i32: 1>} : vector<1x256xi32>
    %c16_i32 = arith.constant 16 : i32
    %c0_i32 = arith.constant 0 : i32
    %7 = arith.cmpi eq, %c16_i32, %c0_i32 : i32
    %c1_i32 = arith.constant 1 : i32
    %8 = arith.select %7, %c1_i32, %c16_i32 : i32
    %9 = vector.broadcast %8 : i32 to vector<1x256xi32>
    %10 = arith.remsi %6, %9 : vector<1x256xi32>
    %c0_i32_6 = arith.constant 0 : i32
    %11 = vector.broadcast %c0_i32_6 : i32 to vector<1x256xi32>
    %12 = arith.cmpi ne, %10, %11 : vector<1x256xi32>
    %c0_i32_7 = arith.constant 0 : i32
    %13 = vector.broadcast %c0_i32_7 : i32 to vector<1x256xi32>
    %14 = arith.cmpi slt, %10, %13 : vector<1x256xi32>
    %c0_i32_8 = arith.constant 0 : i32
    %15 = arith.cmpi slt, %8, %c0_i32_8 : i32
    %16 = vector.broadcast %15 : i1 to vector<1x256xi1>
    %17 = vector.broadcast %16 : vector<1x256xi1> to vector<1x256xi1>
    %18 = arith.xori %14, %17 : vector<1x256xi1>
    %19 = arith.andi %18, %12 : vector<1x256xi1>
    %20 = vector.broadcast %8 : i32 to vector<1x256xi32>
    %21 = arith.addi %10, %20 : vector<1x256xi32>
    %22 = arith.select %19, %21, %10 : vector<1x256xi1>, vector<1x256xi32>
    %c1_i32_9 = arith.constant 1 : i32
    %23 = vector.broadcast %c1_i32_9 : i32 to vector<1x256xi32>
    %24 = arith.cmpi sge, %22, %23 : vector<1x256xi32>
    %c15_i32 = arith.constant 15 : i32
    %25 = vector.broadcast %c15_i32 : i32 to vector<1x256xi32>
    %26 = arith.cmpi slt, %22, %25 : vector<1x256xi32>
    %c0_10 = arith.constant 0 : index
    %c111 = arith.constant 111 : index
    %27 = vector.load %arg5[%c0_10, %c111] : memref<4x512xf32, #tpu.memory_space<vmem>>, vector<4x256xf32>
    %cst_11 = arith.constant 0.000000e+00 : f32
    %28 = vector.shape_cast %24 : vector<1x256xi1> to vector<1x256xi1>
    %29 = vector.broadcast %28 : vector<1x256xi1> to vector<4x256xi1>
    %30 = vector.broadcast %cst_11 : f32 to vector<4x256xf32>
    %31 = arith.select %29, %27, %30 : vector<4x256xi1>, vector<4x256xf32>
    %c0_12 = arith.constant 0 : index
    %c0_13 = arith.constant 0 : index
    %32 = vector.load %arg6[%c0_12, %c0_13] : memref<36x256xf32, #tpu.memory_space<vmem>>, vector<4x256xf32>
    tpu.vector_store %arg6[%c0_12, %c0_13], %31 {strides = array<i32>} : memref<36x256xf32, #tpu.memory_space<vmem>>, vector<4x256xf32>,
    %c0_14 = arith.constant 0 : index
    %c112 = arith.constant 112 : index
    %33 = vector.load %arg5[%c0_14, %c112] : memref<4x512xf32, #tpu.memory_space<vmem>>, vector<4x256xf32>
    %c4 = arith.constant 4 : index
    %c0_15 = arith.constant 0 : index
    %34 = vector.load %arg6[%c4, %c0_15] : memref<36x256xf32, #tpu.memory_space<vmem>>, vector<4x256xf32>
    tpu.vector_store %arg6[%c4, %c0_15], %33 {strides = array<i32>} : memref<36x256xf32, #tpu.memory_space<vmem>>, vector<4x256xf32>,
    %c0_16 = arith.constant 0 : index
    %c113 = arith.constant 113 : index
    %35 = vector.load %arg5[%c0_16, %c113] : memref<4x512xf32, #tpu.memory_space<vmem>>, vector<4x256xf32>
    %cst_17 = arith.constant 0.000000e+00 : f32
    %36 = vector.shape_cast %26 : vector<1x256xi1> to vector<1x256xi1>
    %37 = vector.broadcast %36 : vector<1x256xi1> to vector<4x256xi1>
    %38 = vector.broadcast %cst_17 : f32 to vector<4x256xf32>
    %39 = arith.select %37, %35, %38 : vector<4x256xi1>, vector<4x256xf32>
    %c8 = arith.constant 8 : index
    %c0_18 = arith.constant 0 : index
    %40 = vector.load %arg6[%c8, %c0_18] : memref<36x256xf32, #tpu.memory_space<vmem>>, vector<4x256xf32>
    tpu.vector_store %arg6[%c8, %c0_18], %39 {strides = array<i32>} : memref<36x256xf32, #tpu.memory_space<vmem>>, vector<4x256xf32>,
    %c0_19 = arith.constant 0 : index
    %c127 = arith.constant 127 : index
    %41 = vector.load %arg5[%c0_19, %c127] : memref<4x512xf32, #tpu.memory_space<vmem>>, vector<4x256xf32>
    %cst_20 = arith.constant 0.000000e+00 : f32
    %42 = vector.shape_cast %24 : vector<1x256xi1> to vector<1x256xi1>
    %43 = vector.broadcast %42 : vector<1x256xi1> to vector<4x256xi1>
    %44 = vector.broadcast %cst_20 : f32 to vector<4x256xf32>
    %45 = arith.select %43, %41, %44 : vector<4x256xi1>, vector<4x256xf32>
    %c12 = arith.constant 12 : index
    %c0_21 = arith.constant 0 : index
    %46 = vector.load %arg6[%c12, %c0_21] : memref<36x256xf32, #tpu.memory_space<vmem>>, vector<4x256xf32>
    tpu.vector_store %arg6[%c12, %c0_21], %45 {strides = array<i32>} : memref<36x256xf32, #tpu.memory_space<vmem>>, vector<4x256xf32>,
    %c0_22 = arith.constant 0 : index
    %c128_23 = arith.constant 128 : index
    %47 = vector.load %arg5[%c0_22, %c128_23] : memref<4x512xf32, #tpu.memory_space<vmem>>, vector<4x256xf32>
    %c16 = arith.constant 16 : index
    %c0_24 = arith.constant 0 : index
    %48 = vector.load %arg6[%c16, %c0_24] : memref<36x256xf32, #tpu.memory_space<vmem>>, vector<4x256xf32>
    tpu.vector_store %arg6[%c16, %c0_24], %47 {strides = array<i32>} : memref<36x256xf32, #tpu.memory_space<vmem>>, vector<4x256xf32>,
    %c0_25 = arith.constant 0 : index
    %c129 = arith.constant 129 : index
    %49 = vector.load %arg5[%c0_25, %c129] : memref<4x512xf32, #tpu.memory_space<vmem>>, vector<4x256xf32>
    %cst_26 = arith.constant 0.000000e+00 : f32
    %50 = vector.shape_cast %26 : vector<1x256xi1> to vector<1x256xi1>
    %51 = vector.broadcast %50 : vector<1x256xi1> to vector<4x256xi1>
    %52 = vector.broadcast %cst_26 : f32 to vector<4x256xf32>
    %53 = arith.select %51, %49, %52 : vector<4x256xi1>, vector<4x256xf32>
    %c20 = arith.constant 20 : index
    %c0_27 = arith.constant 0 : index
    %54 = vector.load %arg6[%c20, %c0_27] : memref<36x256xf32, #tpu.memory_space<vmem>>, vector<4x256xf32>
    tpu.vector_store %arg6[%c20, %c0_27], %53 {strides = array<i32>} : memref<36x256xf32, #tpu.memory_space<vmem>>, vector<4x256xf32>,
    %c0_28 = arith.constant 0 : index
    %c143 = arith.constant 143 : index
    %55 = vector.load %arg5[%c0_28, %c143] : memref<4x512xf32, #tpu.memory_space<vmem>>, vector<4x256xf32>
    %cst_29 = arith.constant 0.000000e+00 : f32
    %56 = vector.shape_cast %24 : vector<1x256xi1> to vector<1x256xi1>
    %57 = vector.broadcast %56 : vector<1x256xi1> to vector<4x256xi1>
    %58 = vector.broadcast %cst_29 : f32 to vector<4x256xf32>
    %59 = arith.select %57, %55, %58 : vector<4x256xi1>, vector<4x256xf32>
    %c24 = arith.constant 24 : index
    %c0_30 = arith.constant 0 : index
    %60 = vector.load %arg6[%c24, %c0_30] : memref<36x256xf32, #tpu.memory_space<vmem>>, vector<4x256xf32>
    tpu.vector_store %arg6[%c24, %c0_30], %59 {strides = array<i32>} : memref<36x256xf32, #tpu.memory_space<vmem>>, vector<4x256xf32>,
    %c0_31 = arith.constant 0 : index
    %c144 = arith.constant 144 : index
    %61 = vector.load %arg5[%c0_31, %c144] : memref<4x512xf32, #tpu.memory_space<vmem>>, vector<4x256xf32>
    %c28 = arith.constant 28 : index
    %c0_32 = arith.constant 0 : index
    %62 = vector.load %arg6[%c28, %c0_32] : memref<36x256xf32, #tpu.memory_space<vmem>>, vector<4x256xf32>
    tpu.vector_store %arg6[%c28, %c0_32], %61 {strides = array<i32>} : memref<36x256xf32, #tpu.memory_space<vmem>>, vector<4x256xf32>,
    %c0_33 = arith.constant 0 : index
    %c145 = arith.constant 145 : index
    %63 = vector.load %arg5[%c0_33, %c145] : memref<4x512xf32, #tpu.memory_space<vmem>>, vector<4x256xf32>
    %cst_34 = arith.constant 0.000000e+00 : f32
    %64 = vector.shape_cast %26 : vector<1x256xi1> to vector<1x256xi1>
    %65 = vector.broadcast %64 : vector<1x256xi1> to vector<4x256xi1>
    %66 = vector.broadcast %cst_34 : f32 to vector<4x256xf32>
    %67 = arith.select %65, %63, %66 : vector<4x256xi1>, vector<4x256xf32>
    %c32 = arith.constant 32 : index
    %c0_35 = arith.constant 0 : index
    %68 = vector.load %arg6[%c32, %c0_35] : memref<36x256xf32, #tpu.memory_space<vmem>>, vector<4x256xf32>
    tpu.vector_store %arg6[%c32, %c0_35], %67 {strides = array<i32>} : memref<36x256xf32, #tpu.memory_space<vmem>>, vector<4x256xf32>,
    %c0_36 = arith.constant 0 : index
    %c0_37 = arith.constant 0 : index
    %69 = vector.load %arg2[%c0_36, %c0_37] : memref<16x36xf32, #tpu.memory_space<vmem>>, vector<16x36xf32>
    %c0_38 = arith.constant 0 : index
    %c0_39 = arith.constant 0 : index
    %70 = vector.load %arg6[%c0_38, %c0_39] : memref<36x256xf32, #tpu.memory_space<vmem>>, vector<36x256xf32>
    %cst_40 = arith.constant dense<0.000000e+00> : vector<16x256xf32>
    %71 = tpu.matmul %69, %70, %cst_40 {dimension_numbers = #tpu.dot_dimension_numbers<[1], [0], [0], [1], [0, 0, 1, 1], [], []>} : vector<16x36xf32>, vector<36x256xf32>, vector<16x256xf32> -> vector<16x256xf32>
    %c0_41 = arith.constant 0 : index
    %c0_42 = arith.constant 0 : index
    %72 = vector.load %arg3[%c0_41, %c0_42] : memref<16x1xf32, #tpu.memory_space<vmem>>, vector<16x1xf32>
    %73 = vector.broadcast %72 : vector<16x1xf32> to vector<16x256xf32>
    %74 = arith.addf %71, %73 : vector<16x256xf32>
    %c0_43 = arith.constant 0 : index
    %c0_44 = arith.constant 0 : index
    %c0_45 = arith.constant 0 : index
    %75 = vector.load %arg4[%c0_43, %c0_44, %c0_45] : memref<1x16x256xf32, #tpu.memory_space<vmem>>, vector<1x16x256xf32>
    %76 = vector.shape_cast %75 : vector<1x16x256xf32> to vector<16x256xf32>
    %77 = vector.shape_cast %74 : vector<16x256xf32> to vector<1x16x256xf32>
    tpu.vector_store %arg4[%c0_43, %c0_44, %c0_45], %77 {strides = array<i32>} : memref<1x16x256xf32, #tpu.memory_space<vmem>>, vector<1x16x256xf32>,
    return
  }
  func.func @transform_0(%arg0: i32) -> (i32, i32, i32) {
    %c0_i32 = arith.constant 0 : i32
    %c0_i32_0 = arith.constant 0 : i32
    %c0_i32_1 = arith.constant 0 : i32
    return %arg0, %c0_i32, %c0_i32_0 : i32, i32, i32
  }
  func.func @transform_1(%arg0: i32) -> (i32, i32) {
    %c0_i32 = arith.constant 0 : i32
    %c0_i32_0 = arith.constant 0 : i32
    %c0_i32_1 = arith.constant 0 : i32
    return %c0_i32, %c0_i32_0 : i32, i32
  }
  func.func @transform_2(%arg0: i32) -> (i32, i32) {
    %c0_i32 = arith.constant 0 : i32
    %c0_i32_0 = arith.constant 0 : i32
    %c0_i32_1 = arith.constant 0 : i32
    return %c0_i32, %c0_i32_0 : i32, i32
  }
  func.func @transform_3(%arg0: i32) -> (i32, i32, i32) {
    %c0_i32 = arith.constant 0 : i32
    %c0_i32_0 = arith.constant 0 : i32
    %c0_i32_1 = arith.constant 0 : i32
    return %arg0, %c0_i32, %c0_i32_0 : i32, i32, i32
  }
}

</mosaic_0001>

<llo_original>
// kernel: up_block.1
$region0: #{up_block.1}
  #allocation0 [shape = 'u32[]', space=smem, size = 0x4, offset = 0x4, fixed_abs, tag = 'smem constant byte address 0x4 - core index']
  #allocation1 [shape = 'u32[72,128]{1,0:T(1,128)}', space=vmem, size = 0x9000, scoped, tag = 'internal scratch']
  #allocation2 [shape = 'f32[4,512]{1,0:T(4,128)}', space=vmem, size = 0x2000, scoped, tag = 'scratch operand']
  #allocation3 [shape = 'f32[36,256]{1,0:T(8,128)}', space=vmem, size = 0xa000, scoped, tag = 'scratch operand']
  %s0 = inlined_call_operand.vmem [shape: f32[2,4,256], index: 0, kind: input, shape index: {}]
  %s1 = inlined_call_operand.vmem [shape: f32[16,36], index: 1, kind: input, shape index: {}]
  %s2 = inlined_call_operand.vmem [shape: f32[16,1], index: 2, kind: input, shape index: {}]
  %s3 = inlined_call_operand.vmem [shape: f32[2,16,256], index: 3, kind: output, shape index: {}]
  %s4 = sld [smem:[#allocation0]]
  $region45: #{up_block.1} parent=0
    _
  %s6 = ssub.s32 1, %s4
  %s7 = scalar_select 0, %s6, %s4
  loop: start=0, step=1, limit=4
  $region2: #{up_block.1} parent=0 // loop_pre_header
    _
  $region3: #{up_block.1} parent=0 // loop_header
    %s9 = sphi 0, %s13
    %p10 = scmp.ge.s32.totalorder %s9, 4
    %s19 = sphi 0, %s21
    %s22 = sphi 0, %s19
    %s23 = sphi 0, %s22
    %s39 = sphi 0, %s23
    %s43 = sphi 0, %s43
    %s45 = sphi 0, %s43
    %s46 = sphi 0, %s45
    %s60 = sphi 0, %s46
    %s64 = sphi 0, %s64
    %s66 = sphi 0, %s64
    %s67 = sphi 0, %s66
    %s81 = sphi 0, %s67
    %s87 = sphi 0, %s89
    %s90 = sphi 0, %s87
    %s91 = sphi 0, %s90
    %s107 = sphi 0, %s91
  $region4: #{up_block.1} parent=0 // loop_header_branch
    %12 = sbr.rel (%p10) target = $region8
  $region5: #{up_block.1} parent=0 // loop_body
    %s14 = ssub.s32 %s9, 1
    %s15 = ssub.s32 %s9, 2
    %s16 = sadd.s32 %s9, 1
    %s17 = ssub.s32 %s9, %s16
    %p18 = scmp.eq.s32.totalorder %s17, 0
    %s20 = sadd.s32 %s19, 1
    %s21 = scalar_select %p18, %s19, %s20
    %p24 = pneg %p18
    %p25 = scmp.eq.s32.totalorder %s9, 1
    %p26 = por %p24, %p25
    %p27 = scmp.ne.s32.totalorder %s19, %s22
    %p28 = scmp.eq.s32.totalorder %s9, 0
    %p29 = por %p27, %p28
    %p30 = scmp.ne.s32.totalorder %s19, %s22
    %p31 = scmp.eq.s32.totalorder %s14, 1
    %p32 = por %p30, %p31
    %p33 = scmp.ne.s32.totalorder %s22, %s23
    %p34 = scmp.eq.s32.totalorder %s14, 0
    %p35 = por %p33, %p34
    %p36 = scmp.ne.s32.totalorder %s22, %s23
    %p37 = scmp.eq.s32.totalorder %s15, 1
    %p38 = por %p36, %p37
    %p40 = scmp.ne.s32.totalorder %s23, %s39
    %p41 = scmp.eq.s32.totalorder %s15, 0
    %p42 = por %p40, %p41
    %s44 = sadd.s32 %s43, 1
    %p47 = scmp.eq.s32.totalorder %s9, 1
    %p48 = scmp.ne.s32.totalorder %s43, %s45
    %p49 = scmp.eq.s32.totalorder %s9, 0
    %p50 = por %p48, %p49
    %p51 = scmp.ne.s32.totalorder %s43, %s45
    %p52 = scmp.eq.s32.totalorder %s14, 1
    %p53 = por %p51, %p52
    %p54 = scmp.ne.s32.totalorder %s45, %s46
    %p55 = scmp.eq.s32.totalorder %s14, 0
    %p56 = por %p54, %p55
    %p57 = scmp.ne.s32.totalorder %s45, %s46
    %p58 = scmp.eq.s32.totalorder %s15, 1
    %p59 = por %p57, %p58
    %p61 = scmp.ne.s32.totalorder %s46, %s60
    %p62 = scmp.eq.s32.totalorder %s15, 0
    %p63 = por %p61, %p62
    %s65 = sadd.s32 %s64, 1
    %p68 = scmp.eq.s32.totalorder %s9, 1
    %p69 = scmp.ne.s32.totalorder %s64, %s66
    %p70 = scmp.eq.s32.totalorder %s9, 0
    %p71 = por %p69, %p70
    %p72 = scmp.ne.s32.totalorder %s64, %s66
    %p73 = scmp.eq.s32.totalorder %s14, 1
    %p74 = por %p72, %p73
    %p75 = scmp.ne.s32.totalorder %s66, %s67
    %p76 = scmp.eq.s32.totalorder %s14, 0
    %p77 = por %p75, %p76
    %p78 = scmp.ne.s32.totalorder %s66, %s67
    %p79 = scmp.eq.s32.totalorder %s15, 1
    %p80 = por %p78, %p79
    %p82 = scmp.ne.s32.totalorder %s67, %s81
    %p83 = scmp.eq.s32.totalorder %s15, 0
    %p84 = por %p82, %p83
    %s85 = ssub.s32 %s9, %s16
    %p86 = scmp.eq.s32.totalorder %s85, 0
    %s88 = sadd.s32 %s87, 1
    %s89 = scalar_select %p86, %s87, %s88
    %p92 = pneg %p86
    %p93 = scmp.eq.s32.totalorder %s9, 1
    %p94 = por %p92, %p93
    %p95 = scmp.ne.s32.totalorder %s87, %s90
    %p96 = scmp.eq.s32.totalorder %s9, 0
    %p97 = por %p95, %p96
    %p98 = scmp.ne.s32.totalorder %s87, %s90
    %p99 = scmp.eq.s32.totalorder %s14, 1
    %p100 = por %p98, %p99
    %p101 = scmp.ne.s32.totalorder %s90, %s91
    %p102 = scmp.eq.s32.totalorder %s14, 0
    %p103 = por %p101, %p102
    %p104 = scmp.ne.s32.totalorder %s90, %s91
    %p105 = scmp.eq.s32.totalorder %s15, 1
    %p106 = por %p104, %p105
    %p108 = scmp.ne.s32.totalorder %s91, %s107
    %p109 = scmp.eq.s32.totalorder %s15, 0
    %p110 = por %p108, %p109
    %p111 = scmp.le.s32.totalorder 1, %s9
    %p112 = scmp.lt.s32.totalorder %s9, 3
    %p113 = pnand %p111, %p112
    %p114 = pneg %p113
    // Predicated region
    $region9: #{up_block.1} parent=5 // pred_check
      _
    $region10: #{up_block.1} parent=5 // pred_check_branch
      %116 = sbr.rel (%p113) target = $region12
    $region11: #{up_block.1} parent=5 // pred_region
      %s117 = ssub.s32 %s9, 1
      // Predicated region
      $region13: #{up_block.1} parent=11 // pred_check
        %p118 = pneg %p56
      $region14: #{up_block.1} parent=11 // pred_check_branch
        %120 = sbr.rel (%p118) target = $region16
      $region15: #{up_block.1} parent=11 // pred_region
        _
      $region16: #{up_block.1} parent=11 // pred_fallthru
        _
      // Predicated region
      $region17: #{up_block.1} parent=11 // pred_check
        %p121 = pneg %p77
      $region18: #{up_block.1} parent=11 // pred_check_branch
        %123 = sbr.rel (%p121) target = $region20
      $region19: #{up_block.1} parent=11 // pred_region
        _
      $region20: #{up_block.1} parent=11 // pred_fallthru
        _
    $region12: #{up_block.1} parent=5 // pred_fallthru
      _
    %p124 = scmp.lt.s32.totalorder %s9, 2
    // Predicated region
    $region21: #{up_block.1} parent=5 // pred_check
      %p125 = pneg %p124
    $region22: #{up_block.1} parent=5 // pred_check_branch
      %127 = sbr.rel (%p125) target = $region24
    $region23: #{up_block.1} parent=5 // pred_region
      // Predicated region
      $region25: #{up_block.1} parent=23 // pred_check
        %p128 = pneg %p29
      $region26: #{up_block.1} parent=23 // pred_check_branch
        %130 = sbr.rel (%p128) target = $region28
      $region27: #{up_block.1} parent=23 // pred_region
        %p131 = scmp.lt.s32.totalorder %s9, 1
        %s132 = scalar_select %p131, %s9, 1
        %s133 = smul.addr %s132, 2
        %s134 = smul.addr %s133, 4
        %s135 = scalar_lea.vmem %s0, %s134
      $region28: #{up_block.1} parent=23 // pred_fallthru
        _
    $region24: #{up_block.1} parent=5 // pred_fallthru
      _
    %p136 = scmp.le.s32.totalorder 1, %s9
    %p137 = scmp.lt.s32.totalorder %s9, 3
    %p138 = pnand %p136, %p137
    %p139 = pneg %p138
    // Predicated region
    $region29: #{up_block.1} parent=5 // pred_check
      _
    $region30: #{up_block.1} parent=5 // pred_check_branch
      %141 = sbr.rel (%p138) target = $region32
    $region31: #{up_block.1} parent=5 // pred_region
      %s142 = ssub.s32 %s9, 1
      %p143 = scmp.lt.s32.totalorder %s14, 1
      %s144 = scalar_select %p143, %s14, 1
      %s145 = smul.addr %s144, 2
      %s146 = smul.addr %s145, 4
      %s147 = scalar_lea.vmem %s0, %s146
      %p148 = pneg %p35
      %p149 = pneg %p32
      %p150 = pneg %p56
      %p151 = pneg %p53
      %p152 = pneg %p77
      %p153 = pneg %p74
      %p154 = pneg %p103
      %p155 = pneg %p100
      %p156 = scmp.lt.s32.totalorder %s14, 1
      %s157 = scalar_select %p156, %s14, 1
      %s158 = smul.addr %s157, 4
      %s159 = smul.addr %s158, 8
      %s160 = scalar_lea.vmem %s3, %s159
      %p161 = scmp.lt.s32.totalorder %s14, 1
      %s162 = scalar_select %p161, %s14, 1
      %s163 = smul.addr %s162, 2
      %s164 = smul.addr %s163, 4
      %s165 = scalar_lea.vmem %s0, %s164
      %p166 = scmp.lt.s32.totalorder %s14, 1
      %s167 = scalar_select %p166, %s14, 1
      %s168 = smul.addr %s167, 4
      %s169 = smul.addr %s168, 8
      %s170 = scalar_lea.vmem %s3, %s169
      %171 = vst [vmem:[#allocation2] sm:$0xf] 0.0
      %172 = vst [vmem:[#allocation2 + $0xc] sm:$0xf] 0.0
      %v173 = vld [vmem:[%s165] sm:$0xff]
      %174 = vst [vmem:[#allocation2 + $0x4] sm:$0xff] %v173
      %v175 = vlaneseq
      %v176 = vand.u32 %v175, 127
      %v177 = vadd.s32 %v176, 128
      %vm178 = vcmp.lt.s32.totalorder %v176, 0
      %v179 = vsub.s32 0, %v176
      %v180 = vsel %vm178, %v179, %v176
      %v181 = vshrl.u32 %v180, 4
      %v182 = vand.u32 %v180, 15
      %v183 = vsub.s32 0, %v182
      %v184 = vsel %vm178, %v183, %v182
      %vm185 = vcmp.lt.s32.totalorder %v177, 0
      %v186 = vsub.s32 0, %v177
      %v187 = vsel %vm185, %v186, %v177
      %v188 = vshrl.u32 %v187, 4
      %v189 = vand.u32 %v187, 15
      %v190 = vsub.s32 0, %v189
      %v191 = vsel %vm185, %v190, %v189
      %vm192 = vcmp.ne.s32.totalorder %v184, 0
      %vm193 = vcmp.ne.s32.totalorder %v191, 0
      %vm194 = vcmp.lt.s32.totalorder %v184, 0
      %vm195 = vcmp.lt.s32.totalorder %v191, 0
      %vm196 = vmand %vm194, %vm192
      %vm197 = vmand %vm195, %vm193
      %v198 = vadd.s32 %v184, 16
      %v199 = vadd.s32 %v191, 16
      %v200 = vsel %vm196, %v198, %v184
      %v201 = vsel %vm197, %v199, %v191
      %vm202 = vcmp.ge.s32.totalorder %v200, 1
      %vm203 = vcmp.ge.s32.totalorder %v201, 1
      %vm204 = vcmp.lt.s32.totalorder %v200, 15
      %vm205 = vcmp.lt.s32.totalorder %v201, 15
      %v206 = vld [vmem:[#allocation2] sm:$0xff]
      %v207 = vld [vmem:[#allocation2 + $0x8] sm:$0xf]
      %v208 = vsel %vm202, 1, 0
      %v209 = vsel %vm203, 1, 0
      %vm210 = vcmp.eq.s32.totalorder %v208, 1
      %vm211 = vcmp.eq.s32.totalorder %v209, 1
      %214 = vst [vmem:[#allocation1] ss:$2 sm:$0xff] %v206
      %s215 = scalar_lea.vmem [#allocation1], 16
      %216 = vst [vmem:[%s215] ss:$2 sm:$0xff] %v207
      %v217 = vld.sshfl [vmem:[#allocation1] sm:$0xff pattern:$0x75316420]
      %v218 = vld.sshfl [vmem:[#allocation1 + $0x8] sm:$0xff pattern:$0x75316420]
      %v219 = vld.sshfl [vmem:[#allocation1 + $0x10] sm:$0xff pattern:$0x75316420]
      %220 = vrot.lane.b32.xlu0 %v217, 17
      %v221 = vpop.permute.xlu0 %220
      %222 = vrot.lane.b32.xlu0 %v218, 17
      %v223 = vpop.permute.xlu0 %222
      %224 = vrot.lane.b32.xlu0 %v219, 17
      %v225 = vpop.permute.xlu0 %224
      %vm226 = vcmask 138240
      %v227 = vsel %vm226, %v221, %v223
      %v228 = vsel %vm226, %v223, %v225
      %v231 = vsel %vm210, %v227, 0.0
      %v232 = vsel %vm211, %v228, 0.0
      %233 = vst [vmem:[#allocation3] sm:$0xf] %v231
      %234 = vst [vmem:[#allocation3 + $0x8] sm:$0xf] %v232
      %v235 = vld [vmem:[#allocation2] sm:$0xff]
      %v236 = vld [vmem:[#allocation2 + $0x8] sm:$0xf]
      %s239 = scalar_lea.vmem [#allocation1], 1
      %240 = vst [vmem:[%s239] ss:$2 sm:$0xff] %v235
      %s241 = scalar_lea.vmem [#allocation1], 17
      %242 = vst [vmem:[%s241] ss:$2 sm:$0xff] %v236
      %v243 = vld.sshfl [vmem:[#allocation1] sm:$0xff pattern:$0x75316420]
      %v244 = vld.sshfl [vmem:[#allocation1 + $0x8] sm:$0xff pattern:$0x75316420]
      %v245 = vld.sshfl [vmem:[#allocation1 + $0x10] sm:$0xff pattern:$0x75316420]
      %246 = vrot.lane.b32.xlu0 %v243, 16
      %v247 = vpop.permute.xlu0 %246
      %248 = vrot.lane.b32.xlu0 %v244, 16
      %v249 = vpop.permute.xlu0 %248
      %250 = vrot.lane.b32.xlu0 %v245, 16
      %v251 = vpop.permute.xlu0 %250
      %vm252 = vcmask 130048
      %v253 = vsel %vm252, %v247, %v249
      %v254 = vsel %vm252, %v249, %v251
      %257 = vst [vmem:[#allocation3] sm:$0xf0] %v253
      %258 = vst [vmem:[#allocation3 + $0x8] sm:$0xf0] %v254
      %v259 = vld [vmem:[#allocation2] sm:$0xff]
      %v260 = vld [vmem:[#allocation2 + $0x8] sm:$0xf]
      %v261 = vsel %vm204, 1, 0
      %v262 = vsel %vm205, 1, 0
      %vm263 = vcmp.eq.s32.totalorder %v261, 1
      %vm264 = vcmp.eq.s32.totalorder %v262, 1
      %267 = vst [vmem:[#allocation1] ss:$2 sm:$0xff] %v259
      %s268 = scalar_lea.vmem [#allocation1], 16
      %269 = vst [vmem:[%s268] ss:$2 sm:$0xff] %v260
      %v270 = vld.sshfl [vmem:[#allocation1] sm:$0xff pattern:$0x75316420]
      %v271 = vld.sshfl [vmem:[#allocation1 + $0x8] sm:$0xff pattern:$0x75316420]
      %v272 = vld.sshfl [vmem:[#allocation1 + $0x10] sm:$0xff pattern:$0x75316420]
      %273 = vrot.lane.b32.xlu0 %v270, 15
      %v274 = vpop.permute.xlu0 %273
      %275 = vrot.lane.b32.xlu0 %v271, 15
      %v276 = vpop.permute.xlu0 %275
      %277 = vrot.lane.b32.xlu0 %v272, 15
      %v278 = vpop.permute.xlu0 %277
      %vm279 = vcmask 121856
      %v280 = vsel %vm279, %v274, %v276
      %v281 = vsel %vm279, %v276, %v278
      %v284 = vsel %vm263, %v280, 0.0
      %v285 = vsel %vm264, %v281, 0.0
      %286 = vst [vmem:[#allocation3 + $0x10] sm:$0xf] %v284
      %287 = vst [vmem:[#allocation3 + $0x18] sm:$0xf] %v285
      %v288 = vld [vmem:[#allocation2] sm:$0xff]
      %v289 = vld [vmem:[#allocation2 + $0x8] sm:$0xf]
      %292 = vst [vmem:[#allocation1] ss:$2 sm:$0xff] %v288
      %s293 = scalar_lea.vmem [#allocation1], 16
      %294 = vst [vmem:[%s293] ss:$2 sm:$0xff] %v289
      %v295 = vld.sshfl [vmem:[#allocation1] sm:$0xff pattern:$0x75316420]
      %v296 = vld.sshfl [vmem:[#allocation1 + $0x8] sm:$0xff pattern:$0x75316420]
      %v297 = vld.sshfl [vmem:[#allocation1 + $0x10] sm:$0xff pattern:$0x75316420]
      %298 = vrot.lane.b32.xlu0 %v295, 1
      %v299 = vpop.permute.xlu0 %298
      %300 = vrot.lane.b32.xlu0 %v296, 1
      %v301 = vpop.permute.xlu0 %300
      %302 = vrot.lane.b32.xlu0 %v297, 1
      %v303 = vpop.permute.xlu0 %302
      %vm304 = vcmask 7168
      %v305 = vsel %vm304, %v299, %v301
      %v306 = vsel %vm304, %v301, %v303
      %v309 = vsel %vm210, %v305, 0.0
      %v310 = vsel %vm211, %v306, 0.0
      %v313 = vrot.slane %v309, 4
      %v314 = vrot.slane %v310, 4
      %317 = vst [vmem:[#allocation3 + $0x10] sm:$0xf0] %v313
      %318 = vst [vmem:[#allocation3 + $0x18] sm:$0xf0] %v314
      %v319 = vld [vmem:[#allocation2 + $0x4] sm:$0xff]
      %321 = vst [vmem:[#allocation1] ss:$2 sm:$0xff] %v319
      %v322 = vld.sshfl [vmem:[#allocation1] sm:$0xff pattern:$0x75316420]
      %v323 = vld.sshfl [vmem:[#allocation1 + $0x8] sm:$0xff pattern:$0x75316420]
      %326 = vst [vmem:[#allocation3 + $0x20] sm:$0xf] %v322
      %327 = vst [vmem:[#allocation3 + $0x28] sm:$0xf] %v323
      %v328 = vld [vmem:[#allocation2 + $0x4] sm:$0xff]
      %v329 = vld [vmem:[#allocation2 + $0xc] sm:$0xf]
      %332 = vst [vmem:[#allocation1] ss:$2 sm:$0xff] %v328
      %s333 = scalar_lea.vmem [#allocation1], 16
      %334 = vst [vmem:[%s333] ss:$2 sm:$0xff] %v329
      %v335 = vld.sshfl [vmem:[#allocation1] sm:$0xff pattern:$0x75316420]
      %v336 = vld.sshfl [vmem:[#allocation1 + $0x8] sm:$0xff pattern:$0x75316420]
      %v337 = vld.sshfl [vmem:[#allocation1 + $0x10] sm:$0xff pattern:$0x75316420]
      %338 = vrot.lane.b32.xlu0 %v335, 127
      %v339 = vpop.permute.xlu0 %338
      %340 = vrot.lane.b32.xlu0 %v336, 127
      %v341 = vpop.permute.xlu0 %340
      %342 = vrot.lane.b32.xlu0 %v337, 127
      %v343 = vpop.permute.xlu0 %342
      %vm344 = vcmask 1039360
      %v345 = vsel %vm344, %v339, %v341
      %v346 = vsel %vm344, %v341, %v343
      %v349 = vsel %vm263, %v345, 0.0
      %v350 = vsel %vm264, %v346, 0.0
      %v353 = vrot.slane %v349, 4
      %v354 = vrot.slane %v350, 4
      %357 = vst [vmem:[#allocation3 + $0x20] sm:$0xf0] %v353
      %358 = vst [vmem:[#allocation3 + $0x28] sm:$0xf0] %v354
      %v359 = vld [vmem:[#allocation2 + $0x4] sm:$0xff]
      %v360 = vld [vmem:[#allocation2 + $0xc] sm:$0xf]
      %363 = vst [vmem:[#allocation1] ss:$2 sm:$0xff] %v359
      %s364 = scalar_lea.vmem [#allocation1], 16
      %365 = vst [vmem:[%s364] ss:$2 sm:$0xff] %v360
      %v366 = vld.sshfl [vmem:[#allocation1] sm:$0xff pattern:$0x75316420]
      %v367 = vld.sshfl [vmem:[#allocation1 + $0x8] sm:$0xff pattern:$0x75316420]
      %v368 = vld.sshfl [vmem:[#allocation1 + $0x10] sm:$0xff pattern:$0x75316420]
      %369 = vrot.lane.b32.xlu0 %v366, 113
      %v370 = vpop.permute.xlu0 %369
      %371 = vrot.lane.b32.xlu0 %v367, 113
      %v372 = vpop.permute.xlu0 %371
      %373 = vrot.lane.b32.xlu0 %v368, 113
      %v374 = vpop.permute.xlu0 %373
      %vm375 = vcmask 924672
      %v376 = vsel %vm375, %v370, %v372
      %v377 = vsel %vm375, %v372, %v374
      %v380 = vsel %vm210, %v376, 0.0
      %v381 = vsel %vm211, %v377, 0.0
      %382 = vst [vmem:[#allocation3 + $0x30] sm:$0xf] %v380
      %383 = vst [vmem:[#allocation3 + $0x38] sm:$0xf] %v381
      %v384 = vld [vmem:[#allocation2 + $0x4] sm:$0xff]
      %v385 = vld [vmem:[#allocation2 + $0xc] sm:$0xf]
      %s388 = scalar_lea.vmem [#allocation1], 1
      %389 = vst [vmem:[%s388] ss:$2 sm:$0xff] %v384
      %s390 = scalar_lea.vmem [#allocation1], 17
      %391 = vst [vmem:[%s390] ss:$2 sm:$0xff] %v385
      %v392 = vld.sshfl [vmem:[#allocation1] sm:$0xff pattern:$0x75316420]
      %v393 = vld.sshfl [vmem:[#allocation1 + $0x8] sm:$0xff pattern:$0x75316420]
      %v394 = vld.sshfl [vmem:[#allocation1 + $0x10] sm:$0xff pattern:$0x75316420]
      %395 = vrot.lane.b32.xlu0 %v392, 112
      %v396 = vpop.permute.xlu0 %395
      %397 = vrot.lane.b32.xlu0 %v393, 112
      %v398 = vpop.permute.xlu0 %397
      %399 = vrot.lane.b32.xlu0 %v394, 112
      %v400 = vpop.permute.xlu0 %399
      %vm401 = vcmask 916480
      %v402 = vsel %vm401, %v396, %v398
      %v403 = vsel %vm401, %v398, %v400
      %406 = vst [vmem:[#allocation3 + $0x30] sm:$0xf0] %v402
      %407 = vst [vmem:[#allocation3 + $0x38] sm:$0xf0] %v403
      %v408 = vld [vmem:[#allocation2 + $0x4] sm:$0xff]
      %v409 = vld [vmem:[#allocation2 + $0xc] sm:$0xf]
      %412 = vst [vmem:[#allocation1] ss:$2 sm:$0xff] %v408
      %s413 = scalar_lea.vmem [#allocation1], 16
      %414 = vst [vmem:[%s413] ss:$2 sm:$0xff] %v409
      %v415 = vld.sshfl [vmem:[#allocation1] sm:$0xff pattern:$0x75316420]
      %v416 = vld.sshfl [vmem:[#allocation1 + $0x8] sm:$0xff pattern:$0x75316420]
      %v417 = vld.sshfl [vmem:[#allocation1 + $0x10] sm:$0xff pattern:$0x75316420]
      %418 = vrot.lane.b32.xlu0 %v415, 111
      %v419 = vpop.permute.xlu0 %418
      %420 = vrot.lane.b32.xlu0 %v416, 111
      %v421 = vpop.permute.xlu0 %420
      %422 = vrot.lane.b32.xlu0 %v417, 111
      %v423 = vpop.permute.xlu0 %422
      %vm424 = vcmask 908288
      %v425 = vsel %vm424, %v419, %v421
      %v426 = vsel %vm424, %v421, %v423
      %v429 = vsel %vm263, %v425, 0.0
      %v430 = vsel %vm264, %v426, 0.0
      %431 = vst [vmem:[#allocation3 + $0x40] sm:$0xf] %v429
      %432 = vst [vmem:[#allocation3 + $0x48] sm:$0xf] %v430
      %v433 = vld [vmem:[%s1] sm:$0xff]
      %v434 = vld [vmem:[%s1 + $0x8] sm:$0xff]
      %v435 = vld [vmem:[#allocation3] sm:$0xff]
      %v436 = vld [vmem:[#allocation3 + $0x8] sm:$0xff]
      %v437 = vld [vmem:[#allocation3 + $0x10] sm:$0xff]
      %v438 = vld [vmem:[#allocation3 + $0x18] sm:$0xff]
      %v439 = vld [vmem:[#allocation3 + $0x20] sm:$0xff]
      %v440 = vld [vmem:[#allocation3 + $0x28] sm:$0xff]
      %v441 = vld [vmem:[#allocation3 + $0x30] sm:$0xff]
      %v442 = vld [vmem:[#allocation3 + $0x38] sm:$0xff]
      %v443 = vld [vmem:[#allocation3 + $0x40] sm:$0xf]
      %v444 = vld [vmem:[#allocation3 + $0x48] sm:$0xf]
      %v445 = vld [vmem:[%s2] sm:$0xff]
      %v446 = vld [vmem:[%s2 + $0x8] sm:$0xff]
      %448 = vset.pattern.permute.xlu0 0
      %449 = vperm.xlu0 %448, %v445
      %v450 = vpop.permute.xlu0 %449
      %453 = vset.pattern.permute.xlu0 0
      %454 = vperm.xlu0 %453, %v446
      %v455 = vpop.permute.xlu0 %454
      %vm457 = vcmask 293888
      %v459 = vsel %vm457, %v433, 0
      %v462 = vsel %vm457, %v434, 0
      %vm464 = vcmask 1043456
      %v466 = vsel %vm464, %v443, 0
      %v469 = vsel %vm464, %v444, 0
      %471 = vmatpush.msra.mxu0 0.0
      %472 = vmatpush.msra.mxu0 0.0
      %473 = vmatpush.msra.mxu0 0.0
      %474 = vmatpush.msra.mxu0 0.0
      %475 = vmatpush.msra.mxu0 0.0
      %476 = vmatpush.msra.mxu0 0.0
      %477 = vmatpush.msra.mxu0 0.0
      %478 = vmatpush.msra.mxu0 0.0
      %479 = vmatpush.msra.mxu0 0.0
      %480 = vmatpush.msra.mxu0 0.0
      %481 = vmatpush.msra.mxu0 0.0
      %482 = vmatpush.msra.mxu0 %v466
      %483 = vmatpush.msra.mxu0 %v441
      %484 = vmatpush.msra.mxu0 %v439
      %485 = vmatpush.msra.mxu0 %v437
      %486 = vmatpush.msra.mxu0 %v435
      %487 = vmatmul.f32.gmra.mxu0 %v459
      %v488 = vpop.f32.mrf.mxu0
      %v489 = vadd.f32 %v450, %v488
      %490 = vmatmul.f32.gmra.mxu0 %v462
      %v491 = vpop.f32.mrf.mxu0
      %v492 = vadd.f32 %v455, %v491
      %493 = vdwg.mxu0
      %494 = vmatpush.msra.mxu0 0.0
      %495 = vmatpush.msra.mxu0 0.0
      %496 = vmatpush.msra.mxu0 0.0
      %497 = vmatpush.msra.mxu0 0.0
      %498 = vmatpush.msra.mxu0 0.0
      %499 = vmatpush.msra.mxu0 0.0
      %500 = vmatpush.msra.mxu0 0.0
      %501 = vmatpush.msra.mxu0 0.0
      %502 = vmatpush.msra.mxu0 0.0
      %503 = vmatpush.msra.mxu0 0.0
      %504 = vmatpush.msra.mxu0 0.0
      %505 = vmatpush.msra.mxu0 %v469
      %506 = vmatpush.msra.mxu0 %v442
      %507 = vmatpush.msra.mxu0 %v440
      %508 = vmatpush.msra.mxu0 %v438
      %509 = vmatpush.msra.mxu0 %v436
      %510 = vmatmul.f32.gmra.mxu0 %v459
      %v511 = vpop.f32.mrf.mxu0
      %v512 = vadd.f32 %v450, %v511
      %513 = vmatmul.f32.gmra.mxu0 %v462
      %v514 = vpop.f32.mrf.mxu0
      %v515 = vadd.f32 %v455, %v514
      %516 = vdwg.mxu0
      %517 = vst [vmem:[%s170] sm:$0xff] %v489
      %518 = vst [vmem:[%s170 + $0x8] sm:$0xff] %v512
      %519 = vst [vmem:[%s170 + $0x10] sm:$0xff] %v492
      %520 = vst [vmem:[%s170 + $0x18] sm:$0xff] %v515
      %p521 = scmp.lt.s32.totalorder %s14, 1
      %s522 = scalar_select %p521, %s14, 1
      %s523 = smul.addr %s522, 4
      %s524 = smul.addr %s523, 8
      %s525 = scalar_lea.vmem %s3, %s524
      // Predicated region
      $region33: #{up_block.1} parent=31 // pred_check
        %p526 = pneg %p100
      $region34: #{up_block.1} parent=31 // pred_check_branch
        %528 = sbr.rel (%p526) target = $region36
      $region35: #{up_block.1} parent=31 // pred_region
        _
      $region36: #{up_block.1} parent=31 // pred_fallthru
        _
    $region32: #{up_block.1} parent=5 // pred_fallthru
      _
    %p529 = scmp.le.s32.totalorder 2, %s9
    // Predicated region
    $region37: #{up_block.1} parent=5 // pred_check
      %p530 = pneg %p529
    $region38: #{up_block.1} parent=5 // pred_check_branch
      %532 = sbr.rel (%p530) target = $region40
    $region39: #{up_block.1} parent=5 // pred_region
      %s533 = ssub.s32 %s9, 2
      // Predicated region
      $region41: #{up_block.1} parent=39 // pred_check
        %p534 = pneg %p106
      $region42: #{up_block.1} parent=39 // pred_check_branch
        %536 = sbr.rel (%p534) target = $region44
      $region43: #{up_block.1} parent=39 // pred_region
        %p537 = scmp.lt.s32.totalorder %s15, 1
        %s538 = scalar_select %p537, %s15, 1
        %s539 = smul.addr %s538, 4
        %s540 = smul.addr %s539, 8
        %s541 = scalar_lea.vmem %s3, %s540
      $region44: #{up_block.1} parent=39 // pred_fallthru
        _
    $region40: #{up_block.1} parent=5 // pred_fallthru
      _
  $region6: #{up_block.1} parent=0 // loop_footer
    %s13 = sadd.s32 1, %s9
  $region7: #{up_block.1} parent=0 // loop_footer_branch
    %8 = sbr.rel target = $region3
  $region8: #{up_block.1} parent=0 // loop_exit
    _

</llo_original>
